<compile_context>
chip_gen: v7x
topology: tpu7x:2x2x1
jax: 0.10.0
libtpu: 0.0.40
codegen_flags: <defaults>
</compile_context>

<pallas_src>
import functools

import jax
import jax.numpy as jnp
from jax import lax
from jax.experimental import pallas as pl
from jax.experimental.pallas import tpu as pltpu


def _round_up(a: int, b: int) -> int:
    return ((a + b - 1) // b) * b


def _pick_tile(dim: int, max_tile: int, align: int) -> int:
    """Largest tile <= max_tile (align-rounded) that divides dim with minimal pad."""
    nblk = max(1, -(-dim // max_tile))           # ceil(dim / max_tile)
    t = _round_up(-(-dim // nblk), align)        # ceil(dim / nblk), aligned
    return min(t, _round_up(dim, align))


def _linear_kernel(x_ref, w_ref, b_ref, o_ref):
    """One (tm, tn) f32 output tile; o_ref is resident across the K grid axis."""
    @pl.when(pl.program_id(2) == 0)
    def _():
        o_ref[...] = jnp.broadcast_to(b_ref[...], o_ref.shape)

    # x: (tm, tk), w: (tn, tk)  ->  x @ w^T : (tm, tn), f32 MXU accumulation.
    o_ref[...] += lax.dot_general(
        x_ref[...], w_ref[...],
        dimension_numbers=(((1,), (1,)), ((), ())),
        preferred_element_type=jnp.float32,
    )


def _linear_lora_kernel(x_ref, w_ref, b_ref, xa_ref, bl_ref, o_ref):
    """Same as _linear_kernel, with the low-rank LoRA term fused into tile init."""
    @pl.when(pl.program_id(2) == 0)
    def _():
        # bias + (lora_alpha * x @ A) @ B  -- a tiny (tm, r) x (r, tn) matmul.
        o_ref[...] = jnp.broadcast_to(b_ref[...], o_ref.shape) + jnp.dot(
            xa_ref[...], bl_ref[...], preferred_element_type=jnp.float32
        )

    o_ref[...] += lax.dot_general(
        x_ref[...], w_ref[...],
        dimension_numbers=(((1,), (1,)), ((), ())),
        preferred_element_type=jnp.float32,
    )


@functools.partial(jax.jit, static_argnames=("tm", "tn", "tk"))
def _linear_pallas(x2, w, bias2, xa, bl, *, tm, tn, tk):
    M, K = x2.shape
    N = w.shape[0]
    grid = (M // tm, N // tn, K // tk)

    # NOTE(v5e): if profiling shows exposed DMA, add
    # pipeline_mode=pl.Buffered(3) to the x / w BlockSpecs below.
    in_specs = [
        pl.BlockSpec((tm, tk), lambda i, j, k: (i, k)),   # x tile
        pl.BlockSpec((tn, tk), lambda i, j, k: (j, k)),   # weight tile, native (N, K)
        pl.BlockSpec((1, tn), lambda i, j, k: (0, j)),    # bias tile
    ]
    args = [x2, w, bias2]
    kernel = _linear_kernel

    if xa is not None:
        r = xa.shape[1]
        in_specs += [
            pl.BlockSpec((tm, r), lambda i, j, k: (i, 0)),   # alpha * (x @ A)
            pl.BlockSpec((r, tn), lambda i, j, k: (0, j)),   # lora_B
        ]
        args += [xa, bl]
        kernel = _linear_lora_kernel

    return pl.pallas_call(
        kernel,
        out_shape=jax.ShapeDtypeStruct((M, N), jnp.float32),
        grid_spec=pltpu.PrefetchScalarGridSpec(
            num_scalar_prefetch=0,
            grid=grid,
            in_specs=in_specs,
            out_specs=pl.BlockSpec((tm, tn), lambda i, j, k: (i, j)),
        ),
        compiler_params=pltpu.CompilerParams(
            dimension_semantics=("parallel", "parallel", "arbitrary"),
            # Raise v5e's 16 MiB scoped default; fits v7x's 64 MiB physical VMEM.
            vmem_limit_bytes=32 * 1024 * 1024,
        ),
    )(*args)


def cuda_linear(x, weight, bias=None, lora_A=None, lora_B=None, lora_alpha=1.0,
                *, compute_dtype=None, tm=512, tn=512, tk=1024):
    """Pallas TPU equivalent of CUDALinear.forward.

    x:      (..., in_features)
    weight: (out_features, in_features)
    bias:   (out_features,) or None
    lora_A: (in_features, rank) or None
    lora_B: (rank, out_features) or None
    Returns a float32 array of shape (..., out_features), like the CUDA path.
    """
    orig_shape = x.shape
    in_features = orig_shape[-1]
    out_features = weight.shape[0]

    # Operands keep their native dtype (bf16 runs at the native MXU rate and
    # halves DMA traffic); accumulation / output are always f32.
    if compute_dtype is None:
        compute_dtype = jnp.promote_types(x.dtype, weight.dtype)
    x2 = x.reshape(-1, in_features).astype(compute_dtype)
    w = weight.astype(compute_dtype)           # native (N, K) layout, no transpose
    M, K = x2.shape
    N = out_features

    # LoRA low-rank path: compute alpha * (x @ A) once (M x r, tiny); the @ B
    # and the add happen inside the kernel epilogue.  Never densify A @ B.
    xa = bl = None
    if lora_A is not None and lora_B is not None:
        r = lora_A.shape[1]
        xa = jnp.float32(lora_alpha) * (
            x2.astype(jnp.float32) @ lora_A.astype(jnp.float32)
        )
        bl = lora_B.astype(jnp.float32)

    # ---- adaptive tile selection (minimal padding, MXU-friendly alignment) ----
    tm = _pick_tile(M, tm, 8)
    tn = _pick_tile(N, tn, 128)   # 512 default keeps 256-alignment for v6e/v7x MXU
    tk = _pick_tile(K, tk, 128)

    # v7x has 2 TensorCores: if the parallel (M, N) grid is a single block,
    # split N so dimension_semantics=("parallel", ...) can use both cores.
    if (_round_up(M, tm) // tm) * (_round_up(N, tn) // tn) == 1 \
            and tn > 128 and N > tn // 2:
        tn = _round_up(tn // 2, 128)

    # ---- pad only when a dimension is not tile-aligned (K pads are zeros,
    #      so they contribute nothing to the reduction) ----
    Mp, Kp, Np = _round_up(M, tm), _round_up(K, tk), _round_up(N, tn)
    if (Mp, Kp) != (M, K):
        x2 = jnp.pad(x2, ((0, Mp - M), (0, Kp - K)))
    if (Np, Kp) != (N, K):
        w = jnp.pad(w, ((0, Np - N), (0, Kp - K)))

    # TODO(synk): when bias is None a zero bias tile is still streamed per
    # output tile (1 x tn, negligible); a bias-less kernel variant would avoid it.
    b = bias.astype(jnp.float32) if bias is not None else jnp.zeros((N,), jnp.float32)
    b2 = (jnp.pad(b, (0, Np - N)) if Np != N else b).reshape(1, Np)

    if xa is not None:
        r = xa.shape[1]
        rp = _round_up(r, 128)
        xa = jnp.pad(xa, ((0, Mp - M), (0, rp - r)))
        bl = jnp.pad(bl, ((0, rp - r), (0, Np - N)))

    out = _linear_pallas(x2, w, b2, xa, bl, tm=tm, tn=tn, tk=tk)
    if (Mp, Np) != (M, N):
        out = out[:M, :N]
    return out.reshape(*orig_shape[:-1], N)


if __name__ == "__main__":
    key = jax.random.PRNGKey(0)
    k_x, k_w, k_b, k_la, k_lb = jax.random.split(key, 5)

    # Small shapes consistent with the module: (batch, seq, hidden) input.
    batch, seq, in_features, out_features = 2, 8, 32, 32
    x = jax.random.normal(k_x, (batch, seq, in_features), dtype=jnp.float32)
    weight = jax.random.normal(k_w, (out_features, in_features), dtype=jnp.float32)
    bias = jax.random.normal(k_b, (out_features,), dtype=jnp.float32)

    # TODO(synk): CUDA stream / raw ctypes pointer plumbing has no Pallas
    # equivalent; only the math of cuda_gemm is reproduced.

    # --- plain linear (lora_A / lora_B are None in the module as built) ---
    out = cuda_linear(x, weight, bias)
    out = jax.block_until_ready(out)
    ref = (x.reshape(-1, in_features) @ weight.T + bias).reshape(
        batch, seq, out_features
    )
    assert out.shape == ref.shape, f"shape mismatch {out.shape} vs {ref.shape}"
    assert out.dtype == jnp.float32, f"dtype mismatch {out.dtype}"
    # MXU f32 matmuls may use multi-pass bf16 decompositions; keep a tolerance
    # that covers any of Mosaic's f32 paths.
    assert jnp.allclose(out, ref, atol=2e-2, rtol=2e-2), "mismatch vs reference"

    # --- LoRA path (fused low-rank epilogue) ---
    rank, alpha = 4, 0.5
    lora_A = jax.random.normal(k_la, (in_features, rank), dtype=jnp.float32)
    lora_B = jax.random.normal(k_lb, (rank, out_features), dtype=jnp.float32)
    out_l = cuda_linear(x, weight, bias, lora_A, lora_B, alpha)
    out_l = jax.block_until_ready(out_l)
    ref_l = ref + alpha * ((x.reshape(-1, in_features) @ lora_A) @ lora_B).reshape(
        batch, seq, out_features
    )
    assert jnp.allclose(out_l, ref_l, atol=2e-2, rtol=2e-2), "LoRA mismatch"

    print("KERNEL_OK")
</pallas_src>

<mosaic_0001>
module attributes {stable_mosaic.version = 11 : i64} {
  func.func @_linear_kernel(%arg0: i32, %arg1: i32, %arg2: i32, %arg3: memref<16x128xf32, #tpu.memory_space<vmem>>, %arg4: memref<128x128xf32, #tpu.memory_space<vmem>>, %arg5: memref<1x128xf32, #tpu.memory_space<vmem>>, %arg6: memref<16x128xf32, #tpu.memory_space<vmem>>) attributes {dimension_semantics = [#tpu.dimension_semantics<parallel>, #tpu.dimension_semantics<parallel>, #tpu.dimension_semantics<arbitrary>], iteration_bounds = array<i64: 1, 1, 1>, scalar_prefetch = 0 : i64, scratch_operands = 0 : i64, tpu.core_type = #tpu.core_type<tc>, window_params = [{transform_indices = @transform_0, window_bounds = array<i64: 16, 128>}, {transform_indices = @transform_1, window_bounds = array<i64: 128, 128>}, {transform_indices = @transform_2, window_bounds = array<i64: 1, 128>}, {transform_indices = @transform_3, window_bounds = array<i64: 16, 128>}]} {
    %c0_i32 = arith.constant 0 : i32
    %0 = arith.cmpi eq, %arg2, %c0_i32 : i32
    %1 = arith.extui %0 : i1 to i32
    %c0_i32_0 = arith.constant 0 : i32
    %2 = arith.cmpi ne, %1, %c0_i32_0 : i32
    scf.if %2 {
      %c0_8 = arith.constant 0 : index
      %c0_9 = arith.constant 0 : index
      %9 = vector.load %arg5[%c0_8, %c0_9] : memref<1x128xf32, #tpu.memory_space<vmem>>, vector<1x128xf32>
      %10 = vector.shape_cast %9 : vector<1x128xf32> to vector<1x128xf32>
      %11 = vector.broadcast %10 : vector<1x128xf32> to vector<16x128xf32>
      %c0_10 = arith.constant 0 : index
      %c0_11 = arith.constant 0 : index
      %12 = vector.load %arg6[%c0_10, %c0_11] : memref<16x128xf32, #tpu.memory_space<vmem>>, vector<16x128xf32>
      tpu.vector_store %arg6[%c0_10, %c0_11], %11 {strides = array<i32>} : memref<16x128xf32, #tpu.memory_space<vmem>>, vector<16x128xf32>,
    } else {
    }
    %c0 = arith.constant 0 : index
    %c0_1 = arith.constant 0 : index
    %3 = vector.load %arg6[%c0, %c0_1] : memref<16x128xf32, #tpu.memory_space<vmem>>, vector<16x128xf32>
    %c0_2 = arith.constant 0 : index
    %c0_3 = arith.constant 0 : index
    %4 = vector.load %arg3[%c0_2, %c0_3] : memref<16x128xf32, #tpu.memory_space<vmem>>, vector<16x128xf32>
    %c0_4 = arith.constant 0 : index
    %c0_5 = arith.constant 0 : index
    %5 = vector.load %arg4[%c0_4, %c0_5] : memref<128x128xf32, #tpu.memory_space<vmem>>, vector<128x128xf32>
    %cst = arith.constant dense<0.000000e+00> : vector<16x128xf32>
    %6 = tpu.matmul %4, %5, %cst {dimension_numbers = #tpu.dot_dimension_numbers<[1], [1], [0], [0], [0, 0, 1, 0], [], []>} : vector<16x128xf32>, vector<128x128xf32>, vector<16x128xf32> -> vector<16x128xf32>
    %7 = arith.addf %3, %6 : vector<16x128xf32>
    %c0_6 = arith.constant 0 : index
    %c0_7 = arith.constant 0 : index
    %8 = vector.load %arg6[%c0_6, %c0_7] : memref<16x128xf32, #tpu.memory_space<vmem>>, vector<16x128xf32>
    tpu.vector_store %arg6[%c0_6, %c0_7], %7 {strides = array<i32>} : memref<16x128xf32, #tpu.memory_space<vmem>>, vector<16x128xf32>,
    return
  }
  func.func @transform_0(%arg0: i32, %arg1: i32, %arg2: i32) -> (i32, i32) {
    %c0_i32 = arith.constant 0 : i32
    return %arg0, %arg2 : i32, i32
  }
  func.func @transform_1(%arg0: i32, %arg1: i32, %arg2: i32) -> (i32, i32) {
    %c0_i32 = arith.constant 0 : i32
    return %arg1, %arg2 : i32, i32
  }
  func.func @transform_2(%arg0: i32, %arg1: i32, %arg2: i32) -> (i32, i32) {
    %c0_i32 = arith.constant 0 : i32
    %c0_i32_0 = arith.constant 0 : i32
    return %c0_i32, %arg1 : i32, i32
  }
  func.func @transform_3(%arg0: i32, %arg1: i32, %arg2: i32) -> (i32, i32) {
    %c0_i32 = arith.constant 0 : i32
    return %arg0, %arg1 : i32, i32
  }
}

</mosaic_0001>

<llo_original>
// kernel: _linear_pallas.1
$region0: #{_linear_pallas.1}
  #allocation0 [shape = 'u32[]', space=smem, size = 0x4, offset = 0x4, fixed_abs, tag = 'smem constant byte address 0x4 - core index']
  #allocation1 [shape = 'u32[144,128]{1,0:T(1,128)}', space=vmem, size = 0x12000, scoped, tag = 'internal scratch']
  %s0 = inlined_call_operand.hbm [shape: f32[16,128], index: 0, kind: input, shape index: {}]
  %s1 = inlined_call_operand.hbm [shape: f32[128,128], index: 1, kind: input, shape index: {}]
  %s2 = inlined_call_operand.vmem [shape: f32[1,128], index: 2, kind: input, shape index: {}]
  %s3 = inlined_call_operand.hbm [shape: f32[16,128], index: 3, kind: output, shape index: {}]
  %s4 = sld [smem:[#allocation0]]
  $region34: #{_linear_pallas.1} parent=0
    _
  %s6 = ssub.s32 1, %s4
  %s7 = scalar_select 0, %s6, %s4
  $region1: #{_linear_pallas.1} parent=0
    #allocation2 [shape = 'u8[8192]{0}', space=vmem, size = 0x2000, scoped, tag = 'input window, operand 0, single buffered']
    #allocation3 [shape = 's32[1]{0}', space=sflag, size = 0x4, scoped, tag = 'scoped memory for _linear_pallas.1']
    #allocation4 [shape = 's32[1]{0}', space=sflag, size = 0x4, scoped, tag = 'scoped memory for _linear_pallas.1']
    #allocation5 [shape = 'u8[65536]{0}', space=vmem, size = 0x10000, scoped, tag = 'input window, operand 1, single buffered']
    #allocation6 [shape = 's32[1]{0}', space=sflag, size = 0x4, scoped, tag = 'scoped memory for _linear_pallas.1']
    #allocation7 [shape = 'u8[8192]{0}', space=vmem, size = 0x2000, scoped, tag = 'output window, operand 0, single buffered']
    %8 = vsyncpa [#allocation3], 0
    %9 = vsyncpa [#allocation6], 0
    %10 = vsyncpa [#allocation4], 0
    // Predicated region
    $region2: #{_linear_pallas.1} parent=1 // pred_check
      _
    $region3: #{_linear_pallas.1} parent=1 // pred_check_branch
      %12 = sbr.rel (0) target = $region5
    $region4: #{_linear_pallas.1} parent=1 // pred_region
      %s14 = ssub.s32 256, 256
      %15 = vsyncadd [#allocation3], %s14
      %s16 = sshll.u32 [#allocation2], 4
      %s17 = int_to_ptr.vmem [resolvable:$true] %s16
      %22 = dma.hbm_to_vmem [thread:$0]  %s0, 256, %s17, [#allocation3], 128, 128, 8
    $region5: #{_linear_pallas.1} parent=1 // pred_fallthru
      _
    // Predicated region
    $region6: #{_linear_pallas.1} parent=1 // pred_check
      _
    $region7: #{_linear_pallas.1} parent=1 // pred_check_branch
      %24 = sbr.rel (0) target = $region9
    $region8: #{_linear_pallas.1} parent=1 // pred_region
      %s26 = ssub.s32 2048, 2048
      %27 = vsyncadd [#allocation6], %s26
      %s28 = sshll.u32 [#allocation5], 4
      %s29 = int_to_ptr.vmem [resolvable:$true] %s28
      %34 = dma.hbm_to_vmem [thread:$0]  %s1, 2048, %s29, [#allocation6], 128, 128, 8
    $region9: #{_linear_pallas.1} parent=1 // pred_fallthru
      _
    // Predicated region
    $region10: #{_linear_pallas.1} parent=1 // pred_check
      _
    $region11: #{_linear_pallas.1} parent=1 // pred_check_branch
      %36 = sbr.rel (0) target = $region13
    $region12: #{_linear_pallas.1} parent=1 // pred_region
      _
    $region13: #{_linear_pallas.1} parent=1 // pred_fallthru
      _
    // Predicated region
    $region14: #{_linear_pallas.1} parent=1 // pred_check
      _
    $region15: #{_linear_pallas.1} parent=1 // pred_check_branch
      %38 = sbr.rel (0) target = $region17
    $region16: #{_linear_pallas.1} parent=1 // pred_region
      %39 = dma.done [#allocation3], 256
    $region17: #{_linear_pallas.1} parent=1 // pred_fallthru
      _
    // Predicated region
    $region18: #{_linear_pallas.1} parent=1 // pred_check
      _
    $region19: #{_linear_pallas.1} parent=1 // pred_check_branch
      %41 = sbr.rel (0) target = $region21
    $region20: #{_linear_pallas.1} parent=1 // pred_region
      %42 = dma.done [#allocation6], 2048
    $region21: #{_linear_pallas.1} parent=1 // pred_fallthru
      _
    %p43 = scmp.eq.s32.totalorder 0, 0
    // Predicated region
    $region22: #{_linear_pallas.1} parent=1 // pred_check
      %p44 = pneg %p43
    $region23: #{_linear_pallas.1} parent=1 // pred_check_branch
      %46 = sbr.rel (%p44) target = $region25
    $region24: #{_linear_pallas.1} parent=1 // pred_region
      %v47 = vld [vmem:[%s2] sm:$0x1]
      %v49 = vlaneseq
      %v50 = vshrl.u32 %v49, 7
      %v51 = vsub.s32 0, %v50
      %v52 = vrot.slane %v47, %v51
      %54 = vst [vmem:[#allocation7] sm:$0xff] %v52
      %55 = vst [vmem:[#allocation7 + $0x8] sm:$0xff] %v52
    $region25: #{_linear_pallas.1} parent=1 // pred_fallthru
      _
    %v56 = vld [vmem:[#allocation7] sm:$0xff]
    %v57 = vld [vmem:[#allocation7 + $0x8] sm:$0xff]
    %v58 = vld [vmem:[#allocation2] sm:$0xff]
    %v59 = vld [vmem:[#allocation2 + $0x8] sm:$0xff]
    %v60 = vld [vmem:[#allocation5] sm:$0xff]
    %v61 = vld [vmem:[#allocation5 + $0x8] sm:$0xff]
    %v62 = vld [vmem:[#allocation5 + $0x10] sm:$0xff]
    %v63 = vld [vmem:[#allocation5 + $0x18] sm:$0xff]
    %v64 = vld [vmem:[#allocation5 + $0x20] sm:$0xff]
    %v65 = vld [vmem:[#allocation5 + $0x28] sm:$0xff]
    %v66 = vld [vmem:[#allocation5 + $0x30] sm:$0xff]
    %v67 = vld [vmem:[#allocation5 + $0x38] sm:$0xff]
    %v68 = vld [vmem:[#allocation5 + $0x40] sm:$0xff]
    %v69 = vld [vmem:[#allocation5 + $0x48] sm:$0xff]
    %v70 = vld [vmem:[#allocation5 + $0x50] sm:$0xff]
    %v71 = vld [vmem:[#allocation5 + $0x58] sm:$0xff]
    %v72 = vld [vmem:[#allocation5 + $0x60] sm:$0xff]
    %v73 = vld [vmem:[#allocation5 + $0x68] sm:$0xff]
    %v74 = vld [vmem:[#allocation5 + $0x70] sm:$0xff]
    %v75 = vld [vmem:[#allocation5 + $0x78] sm:$0xff]
    %76 = vmatprep.subr.mxu0 0.0
    %77 = vmatpush1.xpose.msra.mxu0 %v60
    %78 = vmatprep.subr.mxu0 0.0
    %79 = vmatpush1.xpose.msra.mxu0 %v61
    %80 = vmatprep.subr.mxu0 0.0
    %81 = vmatpush1.xpose.msra.mxu0 %v62
    %82 = vmatprep.subr.mxu0 0.0
    %83 = vmatpush1.xpose.msra.mxu0 %v63
    %84 = vmatprep.subr.mxu0 0.0
    %85 = vmatpush1.xpose.msra.mxu0 %v64
    %86 = vmatprep.subr.mxu0 0.0
    %87 = vmatpush1.xpose.msra.mxu0 %v65
    %88 = vmatprep.subr.mxu0 0.0
    %89 = vmatpush1.xpose.msra.mxu0 %v66
    %90 = vmatprep.subr.mxu0 0.0
    %91 = vmatpush1.xpose.msra.mxu0 %v67
    %92 = vmatprep.subr.mxu0 0.0
    %93 = vmatpush1.xpose.msra.mxu0 %v68
    %94 = vmatprep.subr.mxu0 0.0
    %95 = vmatpush1.xpose.msra.mxu0 %v69
    %96 = vmatprep.subr.mxu0 0.0
    %97 = vmatpush1.xpose.msra.mxu0 %v70
    %98 = vmatprep.subr.mxu0 0.0
    %99 = vmatpush1.xpose.msra.mxu0 %v71
    %100 = vmatprep.subr.mxu0 0.0
    %101 = vmatpush1.xpose.msra.mxu0 %v72
    %102 = vmatprep.subr.mxu0 0.0
    %103 = vmatpush1.xpose.msra.mxu0 %v73
    %104 = vmatprep.subr.mxu0 0.0
    %105 = vmatpush1.xpose.msra.mxu0 %v74
    %106 = vmatprep.subr.mxu0 0.0
    %107 = vmatpush1.xpose.msra.mxu0 %v75
    %108 = vmatprep.subr.mxu0 0.0
    %109 = vmatpush1.xpose.msra.mxu0 0.0
    %110 = vmatprep.subr.mxu0 0.0
    %111 = vmatpush1.xpose.msra.mxu0 0.0
    %112 = vmatprep.subr.mxu0 0.0
    %113 = vmatpush1.xpose.msra.mxu0 0.0
    %114 = vmatprep.subr.mxu0 0.0
    %115 = vmatpush1.xpose.msra.mxu0 0.0
    %116 = vmatprep.subr.mxu0 0.0
    %117 = vmatpush1.xpose.msra.mxu0 0.0
    %118 = vmatprep.subr.mxu0 0.0
    %119 = vmatpush1.xpose.msra.mxu0 0.0
    %120 = vmatprep.subr.mxu0 0.0
    %121 = vmatpush1.xpose.msra.mxu0 0.0
    %122 = vmatprep.subr.mxu0 0.0
    %123 = vmatpush1.xpose.msra.mxu0 0.0
    %124 = vmatprep.subr.mxu0 0.0
    %125 = vmatpush1.xpose.msra.mxu0 0.0
    %126 = vmatprep.subr.mxu0 0.0
    %127 = vmatpush1.xpose.msra.mxu0 0.0
    %128 = vmatprep.subr.mxu0 0.0
    %129 = vmatpush1.xpose.msra.mxu0 0.0
    %130 = vmatprep.subr.mxu0 0.0
    %131 = vmatpush1.xpose.msra.mxu0 0.0
    %132 = vmatprep.subr.mxu0 0.0
    %133 = vmatpush1.xpose.msra.mxu0 0.0
    %134 = vmatprep.subr.mxu0 0.0
    %135 = vmatpush1.xpose.msra.mxu0 0.0
    %136 = vmatprep.subr.mxu0 0.0
    %137 = vmatpush1.xpose.msra.mxu0 0.0
    %138 = vmatprep.subr.mxu0 0.0
    %139 = vmatpush1.xpose.msra.mxu0 0.0
    %140 = vmatprep.mubr.f32.mxu0 0.0
    %141 = vmatmul.mubr.f32.gmra.mrb[0].mxu0 %v58
    %v142 = vpop.f32.mrb[0].mxu0
    %v143 = vadd.f32 0.0, %v142
    %v144 = vpop.f32.mrb[0].mxu0
    %145 = vmatprep.mubr.f32.mxu0 0.0
    %146 = vmatmul.mubr.f32.gmra.mrb[0].mxu0 %v59
    %v147 = vpop.f32.mrb[0].mxu0
    %v148 = vadd.f32 0.0, %v147
    %v149 = vpop.f32.mrb[0].mxu0
    %150 = vdwg.mxu0
    %v151 = vadd.f32 %v56, %v143
    %v152 = vadd.f32 %v57, %v148
    %153 = vst [vmem:[#allocation7] sm:$0xff] %v151
    %154 = vst [vmem:[#allocation7 + $0x8] sm:$0xff] %v152
    // Predicated region
    $region26: #{_linear_pallas.1} parent=1 // pred_check
      _
    $region27: #{_linear_pallas.1} parent=1 // pred_check_branch
      %156 = sbr.rel (0) target = $region29
    $region28: #{_linear_pallas.1} parent=1 // pred_region
      %s158 = ssub.s32 256, 256
      %159 = vsyncadd [#allocation4], %s158
      %s160 = sshll.u32 [#allocation7], 4
      %s161 = int_to_ptr.vmem [resolvable:$true] %s160
      %166 = dma.vmem_to_hbm [thread:$0]  %s161, 256, %s3, [#allocation4], 128, 128, 8
    $region29: #{_linear_pallas.1} parent=1 // pred_fallthru
      _
    // Predicated region
    $region30: #{_linear_pallas.1} parent=1 // pred_check
      _
    $region31: #{_linear_pallas.1} parent=1 // pred_check_branch
      %168 = sbr.rel (0) target = $region33
    $region32: #{_linear_pallas.1} parent=1 // pred_region
      %169 = dma.done [#allocation4], 256
    $region33: #{_linear_pallas.1} parent=1 // pred_fallthru
      _
    %170 = vsyncpa [#allocation3], 1
    %171 = vsyncpa [#allocation6], 1
    %172 = vsyncpa [#allocation4], 1

</llo_original>
